<compile_context>
chip_gen: v7x
topology: tpu7x:2x2x1
jax: 0.10.0
libtpu: 0.0.40
codegen_flags: <defaults>
</compile_context>

<pallas_src>
import jax
import jax.numpy as jnp
from jax import lax
from jax.experimental import pallas as pl
from jax.experimental.pallas import tpu as pltpu

LN_EPS = 1e-12          # BERT default layer_norm_eps
_CHUNK = 8              # rows processed per inner step (one f32 vreg of sublanes)
_MAX_TILE = 2048        # max tokens per grid step


def _emb_ln_kernel(ids_ref, tt_ref,            # SMEM scalar prefetch: (n_pad,) int32
                   word_ref, type_ref,         # VMEM-resident embedding tables
                   gamma_ref, beta_ref,        # (1, H) LayerNorm affine
                   out_ref):                   # (tile, H) output tile
    tile, H = out_ref.shape
    row0 = pl.program_id(0) * tile

    # Hoisted invariants (broadcasts are not CSE'd by JAX — keep them out of the loop).
    g = gamma_ref[...].astype(jnp.float32)                      # (1, H)
    b = beta_ref[...].astype(jnp.float32)                       # (1, H)
    sub = lax.broadcasted_iota(jnp.int32, (_CHUNK, H), 0)       # sublane index

    def chunk_body(c, carry):
        base = pl.multiple_of(c * _CHUNK, _CHUNK)               # 8-row-aligned offset

        # Gather 8 token rows (word + token-type) into one (8, H) register block.
        x = jnp.zeros((_CHUNK, H), jnp.float32)
        for u in range(_CHUNK):                                 # static unroll
            tok = row0 + base + u
            w = word_ref[pl.ds(ids_ref[tok], 1), :].astype(jnp.float32)   # (1, H)
            t = type_ref[pl.ds(tt_ref[tok], 1), :].astype(jnp.float32)    # (1, H)
            row = jnp.broadcast_to(w + t, (_CHUNK, H))
            x = jnp.where(sub == u, row, x)

        # Fused LayerNorm over the hidden dim for these 8 rows.
        mean = jnp.mean(x, axis=-1, keepdims=True)
        cen = x - mean
        var = jnp.mean(cen * cen, axis=-1, keepdims=True)
        y = cen * lax.rsqrt(var + LN_EPS) * g + b

        # Single aligned, unmasked store per 8-row block.
        out_ref[pl.ds(base, _CHUNK), :] = y.astype(out_ref.dtype)
        return carry

    lax.fori_loop(0, tile // _CHUNK, chunk_body, 0)


def _choose_tile(n_tok, max_tile=_MAX_TILE):
    """Multiple of 8, capped; ~half the tokens per step so the grid has >= 2 steps."""
    target = pl.cdiv(max(n_tok, 1), 2)
    tile = 8 * pl.cdiv(target, 8)
    return int(min(max_tile, max(8, tile)))


def bert_rope_embedding(input_ids, token_type_ids, word_emb, type_emb, gamma, beta,
                        max_tile=_MAX_TILE):
    """input_ids/token_type_ids: int [B, S]; returns f32 [B, S, H]."""
    B, S = input_ids.shape
    H = word_emb.shape[1]
    n_tok = B * S

    if type_emb is None:                       # config.type_vocab_size == 0
        type_emb = jnp.zeros((1, H), word_emb.dtype)
        token_type_ids = jnp.zeros_like(input_ids)
    if token_type_ids is None:                 # module defaults to zeros
        token_type_ids = jnp.zeros_like(input_ids)

    tile = _choose_tile(n_tok, max_tile)
    n_pad = pl.cdiv(n_tok, tile) * tile

    ids_flat = input_ids.reshape(n_tok).astype(jnp.int32)
    tt_flat = token_type_ids.reshape(n_tok).astype(jnp.int32)
    if n_pad != n_tok:
        ids_flat = jnp.pad(ids_flat, (0, n_pad - n_tok))
        tt_flat = jnp.pad(tt_flat, (0, n_pad - n_tok))

    gamma2d = gamma.reshape(1, H).astype(jnp.float32)
    beta2d = beta.reshape(1, H).astype(jnp.float32)

    grid = (n_pad // tile,)

    out = pl.pallas_call(
        _emb_ln_kernel,
        out_shape=jax.ShapeDtypeStruct((n_pad, H), jnp.float32),
        grid_spec=pltpu.PrefetchScalarGridSpec(
            num_scalar_prefetch=2,                               # ids, token_type_ids
            grid=grid,
            in_specs=[
                pl.BlockSpec(word_emb.shape, lambda i, *_: (0, 0)),  # word table (resident)
                pl.BlockSpec(type_emb.shape, lambda i, *_: (0, 0)),  # type table (resident)
                pl.BlockSpec((1, H), lambda i, *_: (0, 0)),          # gamma
                pl.BlockSpec((1, H), lambda i, *_: (0, 0)),          # beta
            ],
            out_specs=pl.BlockSpec((tile, H), lambda i, *_: (i, 0)),
        ),
        compiler_params=pltpu.CompilerParams(
            dimension_semantics=("parallel",)),                  # independent token tiles
    )(ids_flat, tt_flat, word_emb, type_emb, gamma2d, beta2d)

    return out[:n_tok].reshape(B, S, H)


def _reference(input_ids, token_type_ids, word_emb, type_emb, gamma, beta):
    x = jnp.take(word_emb, input_ids, axis=0) + jnp.take(type_emb, token_type_ids, axis=0)
    mean = jnp.mean(x, axis=-1, keepdims=True)
    var = jnp.mean((x - mean) ** 2, axis=-1, keepdims=True)
    return (x - mean) / jnp.sqrt(var + LN_EPS) * gamma + beta


if __name__ == "__main__":
    key = jax.random.PRNGKey(0)
    k_word, k_type, k_gamma, k_beta, k_ids, k_tt = jax.random.split(key, 6)

    # Deterministic synthetic parameters (small shapes consistent with the module).
    VOCAB, TYPE_VOCAB, HIDDEN = 512, 2, 128
    word_emb = jax.random.normal(k_word, (VOCAB, HIDDEN), dtype=jnp.float32) * 0.02
    type_emb = jax.random.normal(k_type, (TYPE_VOCAB, HIDDEN), dtype=jnp.float32) * 0.02
    gamma = 1.0 + 0.1 * jax.random.normal(k_gamma, (HIDDEN,), dtype=jnp.float32)
    beta = 0.1 * jax.random.normal(k_beta, (HIDDEN,), dtype=jnp.float32)

    # Small example inputs: batch=2, seq=8 (16 tokens -> 2 grid steps of 8 rows).
    B, S = 2, 8
    input_ids = jax.random.randint(k_ids, (B, S), 0, VOCAB, dtype=jnp.int32)
    token_type_ids = jax.random.randint(k_tt, (B, S), 0, TYPE_VOCAB, dtype=jnp.int32)

    out = bert_rope_embedding(input_ids, token_type_ids, word_emb, type_emb, gamma, beta)
    out = jax.block_until_ready(out)

    ref = _reference(input_ids, token_type_ids, word_emb, type_emb, gamma, beta)
    assert out.shape == (B, S, HIDDEN)
    assert jnp.allclose(out, ref, atol=1e-5, rtol=1e-5), float(jnp.max(jnp.abs(out - ref)))
    print("KERNEL_OK")
</pallas_src>

<mosaic_0001>
module attributes {stable_mosaic.version = 11 : i64} {
  func.func @_emb_ln_kernel(%arg0: i32, %arg1: memref<16xi32, #tpu.memory_space<smem>>, %arg2: memref<16xi32, #tpu.memory_space<smem>>, %arg3: memref<512x128xf32, #tpu.memory_space<vmem>>, %arg4: memref<2x128xf32, #tpu.memory_space<vmem>>, %arg5: memref<1x128xf32, #tpu.memory_space<vmem>>, %arg6: memref<1x128xf32, #tpu.memory_space<vmem>>, %arg7: memref<8x128xf32, #tpu.memory_space<vmem>>) attributes {dimension_semantics = [#tpu.dimension_semantics<parallel>], iteration_bounds = array<i64: 2>, scalar_prefetch = 2 : i64, scratch_operands = 0 : i64, tpu.core_type = #tpu.core_type<tc>, window_params = [{pipeline_mode = #tpu.pipeline_mode<synchronous>, transform_indices = @transform_0, window_bounds = array<i64: 512, 128>}, {pipeline_mode = #tpu.pipeline_mode<synchronous>, transform_indices = @transform_1, window_bounds = array<i64: 2, 128>}, {pipeline_mode = #tpu.pipeline_mode<synchronous>, transform_indices = @transform_2, window_bounds = array<i64: 1, 128>}, {pipeline_mode = #tpu.pipeline_mode<synchronous>, transform_indices = @transform_3, window_bounds = array<i64: 1, 128>}, {transform_indices = @transform_4, window_bounds = array<i64: 8, 128>}]} {
    %c8_i32 = arith.constant 8 : i32
    %0 = arith.muli %arg0, %c8_i32 : i32
    %c0 = arith.constant 0 : index
    %c0_0 = arith.constant 0 : index
    %1 = vector.load %arg5[%c0, %c0_0] : memref<1x128xf32, #tpu.memory_space<vmem>>, vector<1x128xf32>
    %c0_1 = arith.constant 0 : index
    %c0_2 = arith.constant 0 : index
    %2 = vector.load %arg6[%c0_1, %c0_2] : memref<1x128xf32, #tpu.memory_space<vmem>>, vector<1x128xf32>
    %3 = tpu.iota {dimensions = array<i32: 0>} : vector<8x128xi32>
    %c0_i32 = arith.constant 0 : i32
    %c8_i32_3 = arith.constant 8 : i32
    %4 = arith.muli %c0_i32, %c8_i32_3 : i32
    %5 = tpu.assume_multiple %4, 8 : i32
    %cst = arith.constant 0.000000e+00 : f32
    %6 = vector.broadcast %cst : f32 to vector<8x128xf32>
    %7 = arith.addi %0, %5 : i32
    %c0_i32_4 = arith.constant 0 : i32
    %8 = arith.addi %7, %c0_i32_4 : i32
    %9 = arith.index_cast %8 : i32 to index
    %10 = memref.load %arg1[%9] : memref<16xi32, #tpu.memory_space<smem>>
    %11 = arith.index_cast %10 : i32 to index
    %c0_5 = arith.constant 0 : index
    %12 = vector.load %arg3[%11, %c0_5] : memref<512x128xf32, #tpu.memory_space<vmem>>, vector<1x128xf32>
    %13 = arith.index_cast %8 : i32 to index
    %14 = memref.load %arg2[%13] : memref<16xi32, #tpu.memory_space<smem>>
    %15 = arith.index_cast %14 : i32 to index
    %c0_6 = arith.constant 0 : index
    %16 = vector.load %arg4[%15, %c0_6] : memref<2x128xf32, #tpu.memory_space<vmem>>, vector<1x128xf32>
    %17 = arith.addf %12, %16 : vector<1x128xf32>
    %18 = vector.shape_cast %17 : vector<1x128xf32> to vector<1x128xf32>
    %19 = vector.broadcast %18 : vector<1x128xf32> to vector<8x128xf32>
    %c0_i32_7 = arith.constant 0 : i32
    %20 = vector.broadcast %c0_i32_7 : i32 to vector<8x128xi32>
    %21 = arith.cmpi eq, %3, %20 : vector<8x128xi32>
    %22 = arith.select %21, %19, %6 : vector<8x128xi1>, vector<8x128xf32>
    %23 = arith.addi %0, %5 : i32
    %c1_i32 = arith.constant 1 : i32
    %24 = arith.addi %23, %c1_i32 : i32
    %25 = arith.index_cast %24 : i32 to index
    %26 = memref.load %arg1[%25] : memref<16xi32, #tpu.memory_space<smem>>
    %27 = arith.index_cast %26 : i32 to index
    %c0_8 = arith.constant 0 : index
    %28 = vector.load %arg3[%27, %c0_8] : memref<512x128xf32, #tpu.memory_space<vmem>>, vector<1x128xf32>
    %29 = arith.index_cast %24 : i32 to index
    %30 = memref.load %arg2[%29] : memref<16xi32, #tpu.memory_space<smem>>
    %31 = arith.index_cast %30 : i32 to index
    %c0_9 = arith.constant 0 : index
    %32 = vector.load %arg4[%31, %c0_9] : memref<2x128xf32, #tpu.memory_space<vmem>>, vector<1x128xf32>
    %33 = arith.addf %28, %32 : vector<1x128xf32>
    %34 = vector.shape_cast %33 : vector<1x128xf32> to vector<1x128xf32>
    %35 = vector.broadcast %34 : vector<1x128xf32> to vector<8x128xf32>
    %c1_i32_10 = arith.constant 1 : i32
    %36 = vector.broadcast %c1_i32_10 : i32 to vector<8x128xi32>
    %37 = arith.cmpi eq, %3, %36 : vector<8x128xi32>
    %38 = arith.select %37, %35, %22 : vector<8x128xi1>, vector<8x128xf32>
    %39 = arith.addi %0, %5 : i32
    %c2_i32 = arith.constant 2 : i32
    %40 = arith.addi %39, %c2_i32 : i32
    %41 = arith.index_cast %40 : i32 to index
    %42 = memref.load %arg1[%41] : memref<16xi32, #tpu.memory_space<smem>>
    %43 = arith.index_cast %42 : i32 to index
    %c0_11 = arith.constant 0 : index
    %44 = vector.load %arg3[%43, %c0_11] : memref<512x128xf32, #tpu.memory_space<vmem>>, vector<1x128xf32>
    %45 = arith.index_cast %40 : i32 to index
    %46 = memref.load %arg2[%45] : memref<16xi32, #tpu.memory_space<smem>>
    %47 = arith.index_cast %46 : i32 to index
    %c0_12 = arith.constant 0 : index
    %48 = vector.load %arg4[%47, %c0_12] : memref<2x128xf32, #tpu.memory_space<vmem>>, vector<1x128xf32>
    %49 = arith.addf %44, %48 : vector<1x128xf32>
    %50 = vector.shape_cast %49 : vector<1x128xf32> to vector<1x128xf32>
    %51 = vector.broadcast %50 : vector<1x128xf32> to vector<8x128xf32>
    %c2_i32_13 = arith.constant 2 : i32
    %52 = vector.broadcast %c2_i32_13 : i32 to vector<8x128xi32>
    %53 = arith.cmpi eq, %3, %52 : vector<8x128xi32>
    %54 = arith.select %53, %51, %38 : vector<8x128xi1>, vector<8x128xf32>
    %55 = arith.addi %0, %5 : i32
    %c3_i32 = arith.constant 3 : i32
    %56 = arith.addi %55, %c3_i32 : i32
    %57 = arith.index_cast %56 : i32 to index
    %58 = memref.load %arg1[%57] : memref<16xi32, #tpu.memory_space<smem>>
    %59 = arith.index_cast %58 : i32 to index
    %c0_14 = arith.constant 0 : index
    %60 = vector.load %arg3[%59, %c0_14] : memref<512x128xf32, #tpu.memory_space<vmem>>, vector<1x128xf32>
    %61 = arith.index_cast %56 : i32 to index
    %62 = memref.load %arg2[%61] : memref<16xi32, #tpu.memory_space<smem>>
    %63 = arith.index_cast %62 : i32 to index
    %c0_15 = arith.constant 0 : index
    %64 = vector.load %arg4[%63, %c0_15] : memref<2x128xf32, #tpu.memory_space<vmem>>, vector<1x128xf32>
    %65 = arith.addf %60, %64 : vector<1x128xf32>
    %66 = vector.shape_cast %65 : vector<1x128xf32> to vector<1x128xf32>
    %67 = vector.broadcast %66 : vector<1x128xf32> to vector<8x128xf32>
    %c3_i32_16 = arith.constant 3 : i32
    %68 = vector.broadcast %c3_i32_16 : i32 to vector<8x128xi32>
    %69 = arith.cmpi eq, %3, %68 : vector<8x128xi32>
    %70 = arith.select %69, %67, %54 : vector<8x128xi1>, vector<8x128xf32>
    %71 = arith.addi %0, %5 : i32
    %c4_i32 = arith.constant 4 : i32
    %72 = arith.addi %71, %c4_i32 : i32
    %73 = arith.index_cast %72 : i32 to index
    %74 = memref.load %arg1[%73] : memref<16xi32, #tpu.memory_space<smem>>
    %75 = arith.index_cast %74 : i32 to index
    %c0_17 = arith.constant 0 : index
    %76 = vector.load %arg3[%75, %c0_17] : memref<512x128xf32, #tpu.memory_space<vmem>>, vector<1x128xf32>
    %77 = arith.index_cast %72 : i32 to index
    %78 = memref.load %arg2[%77] : memref<16xi32, #tpu.memory_space<smem>>
    %79 = arith.index_cast %78 : i32 to index
    %c0_18 = arith.constant 0 : index
    %80 = vector.load %arg4[%79, %c0_18] : memref<2x128xf32, #tpu.memory_space<vmem>>, vector<1x128xf32>
    %81 = arith.addf %76, %80 : vector<1x128xf32>
    %82 = vector.shape_cast %81 : vector<1x128xf32> to vector<1x128xf32>
    %83 = vector.broadcast %82 : vector<1x128xf32> to vector<8x128xf32>
    %c4_i32_19 = arith.constant 4 : i32
    %84 = vector.broadcast %c4_i32_19 : i32 to vector<8x128xi32>
    %85 = arith.cmpi eq, %3, %84 : vector<8x128xi32>
    %86 = arith.select %85, %83, %70 : vector<8x128xi1>, vector<8x128xf32>
    %87 = arith.addi %0, %5 : i32
    %c5_i32 = arith.constant 5 : i32
    %88 = arith.addi %87, %c5_i32 : i32
    %89 = arith.index_cast %88 : i32 to index
    %90 = memref.load %arg1[%89] : memref<16xi32, #tpu.memory_space<smem>>
    %91 = arith.index_cast %90 : i32 to index
    %c0_20 = arith.constant 0 : index
    %92 = vector.load %arg3[%91, %c0_20] : memref<512x128xf32, #tpu.memory_space<vmem>>, vector<1x128xf32>
    %93 = arith.index_cast %88 : i32 to index
    %94 = memref.load %arg2[%93] : memref<16xi32, #tpu.memory_space<smem>>
    %95 = arith.index_cast %94 : i32 to index
    %c0_21 = arith.constant 0 : index
    %96 = vector.load %arg4[%95, %c0_21] : memref<2x128xf32, #tpu.memory_space<vmem>>, vector<1x128xf32>
    %97 = arith.addf %92, %96 : vector<1x128xf32>
    %98 = vector.shape_cast %97 : vector<1x128xf32> to vector<1x128xf32>
    %99 = vector.broadcast %98 : vector<1x128xf32> to vector<8x128xf32>
    %c5_i32_22 = arith.constant 5 : i32
    %100 = vector.broadcast %c5_i32_22 : i32 to vector<8x128xi32>
    %101 = arith.cmpi eq, %3, %100 : vector<8x128xi32>
    %102 = arith.select %101, %99, %86 : vector<8x128xi1>, vector<8x128xf32>
    %103 = arith.addi %0, %5 : i32
    %c6_i32 = arith.constant 6 : i32
    %104 = arith.addi %103, %c6_i32 : i32
    %105 = arith.index_cast %104 : i32 to index
    %106 = memref.load %arg1[%105] : memref<16xi32, #tpu.memory_space<smem>>
    %107 = arith.index_cast %106 : i32 to index
    %c0_23 = arith.constant 0 : index
    %108 = vector.load %arg3[%107, %c0_23] : memref<512x128xf32, #tpu.memory_space<vmem>>, vector<1x128xf32>
    %109 = arith.index_cast %104 : i32 to index
    %110 = memref.load %arg2[%109] : memref<16xi32, #tpu.memory_space<smem>>
    %111 = arith.index_cast %110 : i32 to index
    %c0_24 = arith.constant 0 : index
    %112 = vector.load %arg4[%111, %c0_24] : memref<2x128xf32, #tpu.memory_space<vmem>>, vector<1x128xf32>
    %113 = arith.addf %108, %112 : vector<1x128xf32>
    %114 = vector.shape_cast %113 : vector<1x128xf32> to vector<1x128xf32>
    %115 = vector.broadcast %114 : vector<1x128xf32> to vector<8x128xf32>
    %c6_i32_25 = arith.constant 6 : i32
    %116 = vector.broadcast %c6_i32_25 : i32 to vector<8x128xi32>
    %117 = arith.cmpi eq, %3, %116 : vector<8x128xi32>
    %118 = arith.select %117, %115, %102 : vector<8x128xi1>, vector<8x128xf32>
    %119 = arith.addi %0, %5 : i32
    %c7_i32 = arith.constant 7 : i32
    %120 = arith.addi %119, %c7_i32 : i32
    %121 = arith.index_cast %120 : i32 to index
    %122 = memref.load %arg1[%121] : memref<16xi32, #tpu.memory_space<smem>>
    %123 = arith.index_cast %122 : i32 to index
    %c0_26 = arith.constant 0 : index
    %124 = vector.load %arg3[%123, %c0_26] : memref<512x128xf32, #tpu.memory_space<vmem>>, vector<1x128xf32>
    %125 = arith.index_cast %120 : i32 to index
    %126 = memref.load %arg2[%125] : memref<16xi32, #tpu.memory_space<smem>>
    %127 = arith.index_cast %126 : i32 to index
    %c0_27 = arith.constant 0 : index
    %128 = vector.load %arg4[%127, %c0_27] : memref<2x128xf32, #tpu.memory_space<vmem>>, vector<1x128xf32>
    %129 = arith.addf %124, %128 : vector<1x128xf32>
    %130 = vector.shape_cast %129 : vector<1x128xf32> to vector<1x128xf32>
    %131 = vector.broadcast %130 : vector<1x128xf32> to vector<8x128xf32>
    %c7_i32_28 = arith.constant 7 : i32
    %132 = vector.broadcast %c7_i32_28 : i32 to vector<8x128xi32>
    %133 = arith.cmpi eq, %3, %132 : vector<8x128xi32>
    %134 = arith.select %133, %131, %118 : vector<8x128xi1>, vector<8x128xf32>
    %cst_29 = arith.constant dense<0.000000e+00> : vector<8xf32>
    %135 = vector.multi_reduction <add>, %134, %cst_29 [1] : vector<8x128xf32> to vector<8xf32>
    %136 = vector.shape_cast %135 : vector<8xf32> to vector<8x1xf32>
    %cst_30 = arith.constant 1.280000e+02 : f32
    %137 = vector.broadcast %cst_30 : f32 to vector<8x1xf32>
    %138 = arith.divf %136, %137 : vector<8x1xf32>
    %139 = vector.broadcast %138 : vector<8x1xf32> to vector<8x128xf32>
    %140 = arith.subf %134, %139 : vector<8x128xf32>
    %141 = arith.mulf %140, %140 : vector<8x128xf32>
    %cst_31 = arith.constant dense<0.000000e+00> : vector<8xf32>
    %142 = vector.multi_reduction <add>, %141, %cst_31 [1] : vector<8x128xf32> to vector<8xf32>
    %143 = vector.shape_cast %142 : vector<8xf32> to vector<8x1xf32>
    %cst_32 = arith.constant 1.280000e+02 : f32
    %144 = vector.broadcast %cst_32 : f32 to vector<8x1xf32>
    %145 = arith.divf %143, %144 : vector<8x1xf32>
    %cst_33 = arith.constant 9.99999996E-13 : f32
    %146 = vector.broadcast %cst_33 : f32 to vector<8x1xf32>
    %147 = arith.addf %145, %146 : vector<8x1xf32>
    %148 = math.rsqrt %147 : vector<8x1xf32>
    %149 = vector.broadcast %148 : vector<8x1xf32> to vector<8x128xf32>
    %150 = arith.mulf %140, %149 : vector<8x128xf32>
    %151 = vector.broadcast %1 : vector<1x128xf32> to vector<8x128xf32>
    %152 = arith.mulf %150, %151 : vector<8x128xf32>
    %153 = vector.broadcast %2 : vector<1x128xf32> to vector<8x128xf32>
    %154 = arith.addf %152, %153 : vector<8x128xf32>
    %155 = arith.index_cast %5 : i32 to index
    %c0_34 = arith.constant 0 : index
    %156 = vector.load %arg7[%155, %c0_34] : memref<8x128xf32, #tpu.memory_space<vmem>>, vector<8x128xf32>
    tpu.vector_store %arg7[%155, %c0_34], %154 {strides = array<i32>} : memref<8x128xf32, #tpu.memory_space<vmem>>, vector<8x128xf32>,
    %c1_i32_35 = arith.constant 1 : i32
    return
  }
  func.func @transform_0(%arg0: i32, %arg1: memref<16xi32, #tpu.memory_space<smem>>, %arg2: memref<16xi32, #tpu.memory_space<smem>>) -> (i32, i32) {
    %c0_i32 = arith.constant 0 : i32
    %c0_i32_0 = arith.constant 0 : i32
    %c0_i32_1 = arith.constant 0 : i32
    return %c0_i32, %c0_i32_0 : i32, i32
  }
  func.func @transform_1(%arg0: i32, %arg1: memref<16xi32, #tpu.memory_space<smem>>, %arg2: memref<16xi32, #tpu.memory_space<smem>>) -> (i32, i32) {
    %c0_i32 = arith.constant 0 : i32
    %c0_i32_0 = arith.constant 0 : i32
    %c0_i32_1 = arith.constant 0 : i32
    return %c0_i32, %c0_i32_0 : i32, i32
  }
  func.func @transform_2(%arg0: i32, %arg1: memref<16xi32, #tpu.memory_space<smem>>, %arg2: memref<16xi32, #tpu.memory_space<smem>>) -> (i32, i32) {
    %c0_i32 = arith.constant 0 : i32
    %c0_i32_0 = arith.constant 0 : i32
    %c0_i32_1 = arith.constant 0 : i32
    return %c0_i32, %c0_i32_0 : i32, i32
  }
  func.func @transform_3(%arg0: i32, %arg1: memref<16xi32, #tpu.memory_space<smem>>, %arg2: memref<16xi32, #tpu.memory_space<smem>>) -> (i32, i32) {
    %c0_i32 = arith.constant 0 : i32
    %c0_i32_0 = arith.constant 0 : i32
    %c0_i32_1 = arith.constant 0 : i32
    return %c0_i32, %c0_i32_0 : i32, i32
  }
  func.func @transform_4(%arg0: i32, %arg1: memref<16xi32, #tpu.memory_space<smem>>, %arg2: memref<16xi32, #tpu.memory_space<smem>>) -> (i32, i32) {
    %c0_i32 = arith.constant 0 : i32
    %c0_i32_0 = arith.constant 0 : i32
    return %arg0, %c0_i32 : i32, i32
  }
}

</mosaic_0001>

<llo_original>
// kernel: tpu_custom_call.1
$region0: #{tpu_custom_call.1}
  #allocation0 [shape = 'u32[]', space=smem, size = 0x4, offset = 0x4, fixed_abs, tag = 'smem constant byte address 0x4 - core index']
  #allocation1 [shape = 'u32[144,128]{1,0:T(1,128)}', space=vmem, size = 0x12000, scoped, tag = 'internal scratch']
  #allocation2 [shape = 's32[1]{0}', space=sflag, size = 0x4, scoped, tag = 'scoped memory for tpu_custom_call.1']
  #allocation3 [shape = 'u8[512]{0}', space=smem, size = 0x200, scoped, tag = 'prefetched SMEM operand 0']
  #allocation4 [shape = 'u8[512]{0}', space=smem, size = 0x200, scoped, tag = 'prefetched SMEM operand 1']
  %s0 = inlined_call_operand.hbm [shape: s32[16], index: 0, kind: input, shape index: {}]
  %s1 = inlined_call_operand.vmem [shape: s32[16], index: 1, kind: input, shape index: {}]
  %s2 = inlined_call_operand.hbm [shape: f32[512,128], index: 2, kind: input, shape index: {}]
  %s3 = inlined_call_operand.vmem [shape: f32[2,128], index: 3, kind: input, shape index: {}]
  %s4 = inlined_call_operand.vmem [shape: f32[1,128], index: 4, kind: input, shape index: {}]
  %s5 = inlined_call_operand.vmem [shape: f32[1,128], index: 5, kind: input, shape index: {}]
  %s6 = inlined_call_operand.hbm [shape: f32[16,128], index: 6, kind: output, shape index: {}]
  %s7 = sld [smem:[#allocation0]]
  $region53: #{tpu_custom_call.1} parent=0
    _
  %s9 = ssub.s32 1, %s7
  %s10 = scalar_select 0, %s9, %s7
  %12 = dma.hbm_to_smem %s0, 16, [#allocation3], [#allocation2]
  %s13 = sshll.u32 %s1, 4
  %s14 = int_to_ptr.vmem [resolvable:$true] %s13
  %16 = dma.vmem_to_smem %s14, 16, [#allocation4], [#allocation2]
  %17 = dma.done [#allocation2], 32
  %18 = sfence
  $region1: #{tpu_custom_call.1} parent=0
    #allocation5 [shape = 'u8[262144]{0}', space=vmem, size = 0x40000, scoped, tag = 'input window, operand 2, single buffered']
    #allocation6 [shape = 's32[2]{0}', space=sflag, size = 0x8, scoped, tag = 'scoped memory for tpu_custom_call.1']
    #allocation7 [shape = 's32[2]{0}', space=sflag, size = 0x8, scoped, tag = 'scoped memory for tpu_custom_call.1']
    #allocation8 [shape = 'u8[8192]{0}', space=vmem, size = 0x2000, scoped, tag = 'output window, operand 0']
    %19 = vsyncpa [#allocation6], 0
    %20 = vsyncpa [#allocation7], 0
    %s21 = scalar_lea.sflag [#allocation7], 1
    %22 = vsyncpa %s21, 0
    loop: start=0, step=1, limit=4
    $region2: #{tpu_custom_call.1} parent=1 // loop_pre_header
      _
    $region3: #{tpu_custom_call.1} parent=1 // loop_header
      %s24 = sphi 0, %s28
      %p25 = scmp.ge.s32.totalorder %s24, 4
      %s32 = sphi 0, %s32
      %s34 = sphi 0, %s32
      %s35 = sphi 0, %s34
      %s49 = sphi 0, %s35
      %s53 = sphi 0, %s53
      %s55 = sphi 0, %s53
      %s56 = sphi 0, %s55
      %s70 = sphi 0, %s56
      %s74 = sphi 0, %s74
      %s76 = sphi 0, %s74
      %s77 = sphi 0, %s76
      %s91 = sphi 0, %s77
      %s95 = sphi 0, %s95
      %s97 = sphi 0, %s95
      %s98 = sphi 0, %s97
      %s112 = sphi 0, %s98
      %s118 = sphi 0, %s120
      %s121 = sphi 0, %s118
      %s122 = sphi 0, %s121
      %s138 = sphi 0, %s122
    $region4: #{tpu_custom_call.1} parent=1 // loop_header_branch
      %27 = sbr.rel (%p25) target = $region8
    $region5: #{tpu_custom_call.1} parent=1 // loop_body
      %s29 = ssub.s32 %s24, 1
      %s30 = ssub.s32 %s24, 2
      %s31 = sadd.s32 %s24, 1
      %s33 = sadd.s32 %s32, 1
      %p36 = scmp.eq.s32.totalorder %s24, 1
      %p37 = scmp.ne.s32.totalorder %s32, %s34
      %p38 = scmp.eq.s32.totalorder %s24, 0
      %p39 = por %p37, %p38
      %p40 = scmp.ne.s32.totalorder %s32, %s34
      %p41 = scmp.eq.s32.totalorder %s29, 1
      %p42 = por %p40, %p41
      %p43 = scmp.ne.s32.totalorder %s34, %s35
      %p44 = scmp.eq.s32.totalorder %s29, 0
      %p45 = por %p43, %p44
      %p46 = scmp.ne.s32.totalorder %s34, %s35
      %p47 = scmp.eq.s32.totalorder %s30, 1
      %p48 = por %p46, %p47
      %p50 = scmp.ne.s32.totalorder %s35, %s49
      %p51 = scmp.eq.s32.totalorder %s30, 0
      %p52 = por %p50, %p51
      %s54 = sadd.s32 %s53, 1
      %p57 = scmp.eq.s32.totalorder %s24, 1
      %p58 = scmp.ne.s32.totalorder %s53, %s55
      %p59 = scmp.eq.s32.totalorder %s24, 0
      %p60 = por %p58, %p59
      %p61 = scmp.ne.s32.totalorder %s53, %s55
      %p62 = scmp.eq.s32.totalorder %s29, 1
      %p63 = por %p61, %p62
      %p64 = scmp.ne.s32.totalorder %s55, %s56
      %p65 = scmp.eq.s32.totalorder %s29, 0
      %p66 = por %p64, %p65
      %p67 = scmp.ne.s32.totalorder %s55, %s56
      %p68 = scmp.eq.s32.totalorder %s30, 1
      %p69 = por %p67, %p68
      %p71 = scmp.ne.s32.totalorder %s56, %s70
      %p72 = scmp.eq.s32.totalorder %s30, 0
      %p73 = por %p71, %p72
      %s75 = sadd.s32 %s74, 1
      %p78 = scmp.eq.s32.totalorder %s24, 1
      %p79 = scmp.ne.s32.totalorder %s74, %s76
      %p80 = scmp.eq.s32.totalorder %s24, 0
      %p81 = por %p79, %p80
      %p82 = scmp.ne.s32.totalorder %s74, %s76
      %p83 = scmp.eq.s32.totalorder %s29, 1
      %p84 = por %p82, %p83
      %p85 = scmp.ne.s32.totalorder %s76, %s77
      %p86 = scmp.eq.s32.totalorder %s29, 0
      %p87 = por %p85, %p86
      %p88 = scmp.ne.s32.totalorder %s76, %s77
      %p89 = scmp.eq.s32.totalorder %s30, 1
      %p90 = por %p88, %p89
      %p92 = scmp.ne.s32.totalorder %s77, %s91
      %p93 = scmp.eq.s32.totalorder %s30, 0
      %p94 = por %p92, %p93
      %s96 = sadd.s32 %s95, 1
      %p99 = scmp.eq.s32.totalorder %s24, 1
      %p100 = scmp.ne.s32.totalorder %s95, %s97
      %p101 = scmp.eq.s32.totalorder %s24, 0
      %p102 = por %p100, %p101
      %p103 = scmp.ne.s32.totalorder %s95, %s97
      %p104 = scmp.eq.s32.totalorder %s29, 1
      %p105 = por %p103, %p104
      %p106 = scmp.ne.s32.totalorder %s97, %s98
      %p107 = scmp.eq.s32.totalorder %s29, 0
      %p108 = por %p106, %p107
      %p109 = scmp.ne.s32.totalorder %s97, %s98
      %p110 = scmp.eq.s32.totalorder %s30, 1
      %p111 = por %p109, %p110
      %p113 = scmp.ne.s32.totalorder %s98, %s112
      %p114 = scmp.eq.s32.totalorder %s30, 0
      %p115 = por %p113, %p114
      %s116 = ssub.s32 %s24, %s31
      %p117 = scmp.eq.s32.totalorder %s116, 0
      %s119 = sadd.s32 %s118, 1
      %s120 = scalar_select %p117, %s118, %s119
      %p123 = pneg %p117
      %p124 = scmp.eq.s32.totalorder %s24, 1
      %p125 = por %p123, %p124
      %p126 = scmp.ne.s32.totalorder %s118, %s121
      %p127 = scmp.eq.s32.totalorder %s24, 0
      %p128 = por %p126, %p127
      %p129 = scmp.ne.s32.totalorder %s118, %s121
      %p130 = scmp.eq.s32.totalorder %s29, 1
      %p131 = por %p129, %p130
      %p132 = scmp.ne.s32.totalorder %s121, %s122
      %p133 = scmp.eq.s32.totalorder %s29, 0
      %p134 = por %p132, %p133
      %p135 = scmp.ne.s32.totalorder %s121, %s122
      %p136 = scmp.eq.s32.totalorder %s30, 1
      %p137 = por %p135, %p136
      %p139 = scmp.ne.s32.totalorder %s122, %s138
      %p140 = scmp.eq.s32.totalorder %s30, 0
      %p141 = por %p139, %p140
      %p142 = scmp.le.s32.totalorder 1, %s24
      %p143 = scmp.lt.s32.totalorder %s24, 3
      %p144 = pnand %p142, %p143
      %p145 = pneg %p144
      // Predicated region
      $region9: #{tpu_custom_call.1} parent=5 // pred_check
        _
      $region10: #{tpu_custom_call.1} parent=5 // pred_check_branch
        %147 = sbr.rel (%p144) target = $region12
      $region11: #{tpu_custom_call.1} parent=5 // pred_region
        %s148 = ssub.s32 %s24, 1
        // Predicated region
        $region13: #{tpu_custom_call.1} parent=11 // pred_check
          %p149 = pneg %p45
        $region14: #{tpu_custom_call.1} parent=11 // pred_check_branch
          %151 = sbr.rel (%p149) target = $region16
        $region15: #{tpu_custom_call.1} parent=11 // pred_region
          %s153 = ssub.s32 8192, 8192
          %154 = vsyncadd [#allocation6], %s153
          %s155 = sshll.u32 [#allocation5], 4
          %s156 = int_to_ptr.vmem [resolvable:$true] %s155
          %161 = dma.hbm_to_vmem [thread:$0]  %s2, 8192, %s156, [#allocation6], 128, 128, 8
        $region16: #{tpu_custom_call.1} parent=11 // pred_fallthru
          _
        // Predicated region
        $region17: #{tpu_custom_call.1} parent=11 // pred_check
          %p162 = pneg %p66
        $region18: #{tpu_custom_call.1} parent=11 // pred_check_branch
          %164 = sbr.rel (%p162) target = $region20
        $region19: #{tpu_custom_call.1} parent=11 // pred_region
          _
        $region20: #{tpu_custom_call.1} parent=11 // pred_fallthru
          _
        // Predicated region
        $region21: #{tpu_custom_call.1} parent=11 // pred_check
          %p165 = pneg %p87
        $region22: #{tpu_custom_call.1} parent=11 // pred_check_branch
          %167 = sbr.rel (%p165) target = $region24
        $region23: #{tpu_custom_call.1} parent=11 // pred_region
          _
        $region24: #{tpu_custom_call.1} parent=11 // pred_fallthru
          _
        // Predicated region
        $region25: #{tpu_custom_call.1} parent=11 // pred_check
          %p168 = pneg %p108
        $region26: #{tpu_custom_call.1} parent=11 // pred_check_branch
          %170 = sbr.rel (%p168) target = $region28
        $region27: #{tpu_custom_call.1} parent=11 // pred_region
          _
        $region28: #{tpu_custom_call.1} parent=11 // pred_fallthru
          _
      $region12: #{tpu_custom_call.1} parent=5 // pred_fallthru
        _
      %p171 = scmp.lt.s32.totalorder %s24, 2
      // Predicated region
      $region29: #{tpu_custom_call.1} parent=5 // pred_check
        %p172 = pneg %p171
      $region30: #{tpu_custom_call.1} parent=5 // pred_check_branch
        %174 = sbr.rel (%p172) target = $region32
      $region31: #{tpu_custom_call.1} parent=5 // pred_region
        _
      $region32: #{tpu_custom_call.1} parent=5 // pred_fallthru
        _
      %p175 = scmp.le.s32.totalorder 1, %s24
      %p176 = scmp.lt.s32.totalorder %s24, 3
      %p177 = pnand %p175, %p176
      %p178 = pneg %p177
      // Predicated region
      $region33: #{tpu_custom_call.1} parent=5 // pred_check
        _
      $region34: #{tpu_custom_call.1} parent=5 // pred_check_branch
        %180 = sbr.rel (%p177) target = $region36
      $region35: #{tpu_custom_call.1} parent=5 // pred_region
        %s181 = ssub.s32 %s24, 1
        // Predicated region
        $region37: #{tpu_custom_call.1} parent=35 // pred_check
          %p182 = pneg %p45
        $region38: #{tpu_custom_call.1} parent=35 // pred_check_branch
          %184 = sbr.rel (%p182) target = $region40
        $region39: #{tpu_custom_call.1} parent=35 // pred_region
          %185 = dma.done [#allocation6], 8192
        $region40: #{tpu_custom_call.1} parent=35 // pred_fallthru
          _
        %p186 = pneg %p45
        %p187 = pneg %p42
        %p188 = pneg %p66
        %p189 = pneg %p63
        %p190 = pneg %p87
        %p191 = pneg %p84
        %p192 = pneg %p108
        %p193 = pneg %p105
        %p194 = pneg %p134
        %p195 = pneg %p131
        %s196 = sand.u32 %s121, 1
        %s197 = scalar_lea.sflag [#allocation7], %s196
        %s198 = sand.u32 %s121, 1
        %s199 = smul.addr %s198, 8
        %s200 = scalar_lea.vmem [#allocation8], %s199
        %s201 = smul.u32 %s29, 8
        %v202 = vld [vmem:[%s4] sm:$0x1]
        %v203 = vld [vmem:[%s5] sm:$0x1]
        %v204 = vlaneseq
        %v205 = vshrl.u32 %v204, 7
        %s206 = sadd.s32 %s201, 0
        %s207 = sld [smem:[#allocation3 + %s206]]
        %s208 = scalar_lea.vmem [#allocation5], %s207
        %v209 = vld [vmem:[%s208] sm:$0x1]
        %s210 = sld [smem:[#allocation4 + %s206]]
        %s211 = scalar_lea.vmem %s3, %s210
        %v212 = vld [vmem:[%s211] sm:$0x1]
        %v213 = vadd.f32 %v209, %v212
        %v214 = vlaneseq
        %v215 = vshrl.u32 %v214, 7
        %v216 = vsub.s32 0, %v215
        %v217 = vrot.slane %v213, %v216
        %vm218 = vcmp.eq.s32.totalorder %v205, 0
        %v219 = vsel %vm218, %v217, 0.0
        %s220 = sadd.s32 %s206, 1
        %s221 = sld [smem:[#allocation3 + %s220]]
        %s222 = scalar_lea.vmem [#allocation5], %s221
        %v223 = vld [vmem:[%s222] sm:$0x1]
        %s224 = sld [smem:[#allocation4 + %s220]]
        %s225 = scalar_lea.vmem %s3, %s224
        %v226 = vld [vmem:[%s225] sm:$0x1]
        %v227 = vadd.f32 %v223, %v226
        %v228 = vlaneseq
        %v229 = vshrl.u32 %v228, 7
        %v230 = vsub.s32 0, %v229
        %v231 = vrot.slane %v227, %v230
        %vm232 = vcmp.eq.s32.totalorder %v205, 1
        %v233 = vsel %vm232, %v231, %v219
        %s234 = sadd.s32 %s206, 2
        %s235 = sld [smem:[#allocation3 + %s234]]
        %s236 = scalar_lea.vmem [#allocation5], %s235
        %v237 = vld [vmem:[%s236] sm:$0x1]
        %s238 = sld [smem:[#allocation4 + %s234]]
        %s239 = scalar_lea.vmem %s3, %s238
        %v240 = vld [vmem:[%s239] sm:$0x1]
        %v241 = vadd.f32 %v237, %v240
        %v242 = vlaneseq
        %v243 = vshrl.u32 %v242, 7
        %v244 = vsub.s32 0, %v243
        %v245 = vrot.slane %v241, %v244
        %vm246 = vcmp.eq.s32.totalorder %v205, 2
        %v247 = vsel %vm246, %v245, %v233
        %s248 = sadd.s32 %s206, 3
        %s249 = sld [smem:[#allocation3 + %s248]]
        %s250 = scalar_lea.vmem [#allocation5], %s249
        %v251 = vld [vmem:[%s250] sm:$0x1]
        %s252 = sld [smem:[#allocation4 + %s248]]
        %s253 = scalar_lea.vmem %s3, %s252
        %v254 = vld [vmem:[%s253] sm:$0x1]
        %v255 = vadd.f32 %v251, %v254
        %v256 = vlaneseq
        %v257 = vshrl.u32 %v256, 7
        %v258 = vsub.s32 0, %v257
        %v259 = vrot.slane %v255, %v258
        %vm260 = vcmp.eq.s32.totalorder %v205, 3
        %v261 = vsel %vm260, %v259, %v247
        %s262 = sadd.s32 %s206, 4
        %s263 = sld [smem:[#allocation3 + %s262]]
        %s264 = scalar_lea.vmem [#allocation5], %s263
        %v265 = vld [vmem:[%s264] sm:$0x1]
        %s266 = sld [smem:[#allocation4 + %s262]]
        %s267 = scalar_lea.vmem %s3, %s266
        %v268 = vld [vmem:[%s267] sm:$0x1]
        %v269 = vadd.f32 %v265, %v268
        %v270 = vlaneseq
        %v271 = vshrl.u32 %v270, 7
        %v272 = vsub.s32 0, %v271
        %v273 = vrot.slane %v269, %v272
        %vm274 = vcmp.eq.s32.totalorder %v205, 4
        %v275 = vsel %vm274, %v273, %v261
        %s276 = sadd.s32 %s206, 5
        %s277 = sld [smem:[#allocation3 + %s276]]
        %s278 = scalar_lea.vmem [#allocation5], %s277
        %v279 = vld [vmem:[%s278] sm:$0x1]
        %s280 = sld [smem:[#allocation4 + %s276]]
        %s281 = scalar_lea.vmem %s3, %s280
        %v282 = vld [vmem:[%s281] sm:$0x1]
        %v283 = vadd.f32 %v279, %v282
        %v284 = vlaneseq
        %v285 = vshrl.u32 %v284, 7
        %v286 = vsub.s32 0, %v285
        %v287 = vrot.slane %v283, %v286
        %vm288 = vcmp.eq.s32.totalorder %v205, 5
        %v289 = vsel %vm288, %v287, %v275
        %s290 = sadd.s32 %s206, 6
        %s291 = sld [smem:[#allocation3 + %s290]]
        %s292 = scalar_lea.vmem [#allocation5], %s291
        %v293 = vld [vmem:[%s292] sm:$0x1]
        %s294 = sld [smem:[#allocation4 + %s290]]
        %s295 = scalar_lea.vmem %s3, %s294
        %v296 = vld [vmem:[%s295] sm:$0x1]
        %v297 = vadd.f32 %v293, %v296
        %v298 = vlaneseq
        %v299 = vshrl.u32 %v298, 7
        %v300 = vsub.s32 0, %v299
        %v301 = vrot.slane %v297, %v300
        %vm302 = vcmp.eq.s32.totalorder %v205, 6
        %v303 = vsel %vm302, %v301, %v289
        %s304 = sadd.s32 %s206, 7
        %s305 = sld [smem:[#allocation3 + %s304]]
        %s306 = scalar_lea.vmem [#allocation5], %s305
        %v307 = vld [vmem:[%s306] sm:$0x1]
        %s308 = sld [smem:[#allocation4 + %s304]]
        %s309 = scalar_lea.vmem %s3, %s308
        %v310 = vld [vmem:[%s309] sm:$0x1]
        %v311 = vadd.f32 %v307, %v310
        %v312 = vlaneseq
        %v313 = vshrl.u32 %v312, 7
        %v314 = vsub.s32 0, %v313
        %v315 = vrot.slane %v311, %v314
        %vm316 = vcmp.eq.s32.totalorder %v205, 7
        %v317 = vsel %vm316, %v315, %v303
        %318 = vadd.xlane.f32.xlu0 %v317
        %v319 = vpop.xlane.xlu0 %318
        %v320 = vrcp.pop 128.0
        %v321 = vmul.f32 %v319, %v320
        %v322 = vsub.f32 %v317, %v321
        %v323 = vmul.f32 %v322, %v322
        %324 = vadd.xlane.f32.xlu0 %v323
        %v325 = vpop.xlane.xlu0 %324
        %v326 = vmul.f32 %v325, %v320
        %v327 = vadd.f32 %v326, 1e-12
        %v328 = vrsqrt.pop %v327
        %v329 = vmul.f32 %v322, %v328
        %v331 = vlaneseq
        %v332 = vshrl.u32 %v331, 7
        %v333 = vsub.s32 0, %v332
        %v334 = vrot.slane %v202, %v333
        %v336 = vmul.f32 %v329, %v334
        %v338 = vlaneseq
        %v339 = vshrl.u32 %v338, 7
        %v340 = vsub.s32 0, %v339
        %v341 = vrot.slane %v203, %v340
        %v343 = vadd.f32 %v336, %v341
        %344 = vst [vmem:[%s200] sm:$0xff] %v343
        %s345 = sand.u32 %s121, 1
        %s346 = scalar_lea.sflag [#allocation7], %s345
        %s347 = sand.u32 %s121, 1
        %s348 = smul.addr %s347, 8
        %s349 = scalar_lea.vmem [#allocation8], %s348
        // Predicated region
        $region41: #{tpu_custom_call.1} parent=35 // pred_check
          %p350 = pneg %p131
        $region42: #{tpu_custom_call.1} parent=35 // pred_check_branch
          %352 = sbr.rel (%p350) target = $region44
        $region43: #{tpu_custom_call.1} parent=35 // pred_region
          %s354 = ssub.s32 128, 128
          %355 = vsyncadd %s346, %s354
          %s356 = smul.addr %s29, 128
          %s357 = scalar_lea.hbm %s6, %s356
          %s359 = sshll.u32 %s349, 4
          %s360 = int_to_ptr.vmem [resolvable:$true] %s359
          %362 = dma.vmem_to_hbm [thread:$0]  %s360, 128, %s357, %s346
        $region44: #{tpu_custom_call.1} parent=35 // pred_fallthru
          _
      $region36: #{tpu_custom_call.1} parent=5 // pred_fallthru
        _
      %p363 = scmp.le.s32.totalorder 2, %s24
      // Predicated region
      $region45: #{tpu_custom_call.1} parent=5 // pred_check
        %p364 = pneg %p363
      $region46: #{tpu_custom_call.1} parent=5 // pred_check_branch
        %366 = sbr.rel (%p364) target = $region48
      $region47: #{tpu_custom_call.1} parent=5 // pred_region
        %s367 = ssub.s32 %s24, 2
        // Predicated region
        $region49: #{tpu_custom_call.1} parent=47 // pred_check
          %p368 = pneg %p137
        $region50: #{tpu_custom_call.1} parent=47 // pred_check_branch
          %370 = sbr.rel (%p368) target = $region52
        $region51: #{tpu_custom_call.1} parent=47 // pred_region
          %s371 = sand.u32 %s122, 1
          %s372 = scalar_lea.sflag [#allocation7], %s371
          %s373 = sand.u32 %s122, 1
          %s374 = smul.addr %s373, 8
          %s375 = scalar_lea.vmem [#allocation8], %s374
          %376 = dma.done %s372, 128
        $region52: #{tpu_custom_call.1} parent=47 // pred_fallthru
          _
      $region48: #{tpu_custom_call.1} parent=5 // pred_fallthru
        _
    $region6: #{tpu_custom_call.1} parent=1 // loop_footer
      %s28 = sadd.s32 1, %s24
    $region7: #{tpu_custom_call.1} parent=1 // loop_footer_branch
      %23 = sbr.rel target = $region3
    $region8: #{tpu_custom_call.1} parent=1 // loop_exit
      _
    %377 = vsyncpa [#allocation6], 1
    %s378 = scalar_lea.sflag [#allocation6], 1
    %379 = vsyncpa %s378, 1
    %380 = vsyncpa [#allocation7], 1
    %s381 = scalar_lea.sflag [#allocation7], 1
    %382 = vsyncpa %s381, 1

</llo_original>
